<compile_context>
chip_gen: v7x
topology: tpu7x:2x2x1
jax: 0.10.0
libtpu: 0.0.40
codegen_flags: <defaults>
</compile_context>

<pallas_src>
import jax
import jax.numpy as jnp
from jax.experimental import pallas as pl
from jax.experimental.pallas import tpu as pltpu

FEATURE_DIM = 16
SEQ_LEN = 15          # matches EnsembleModel default seq_len
BATCH = 4
N_MODELS = 3          # matches EnsembleModel default
HIDDEN_DIMS = [96, 128, 64]

H_PAD = 128                      # padded hidden width per horizon (lane dim)
CH = 3 * H_PAD                   # per-model lane chunk [short|med|long] = 384
W_ALL = N_MODELS * CH            # merged lane width for all models = 1152
K_REAL = 3 * FEATURE_DIM         # concatenated feature width = 48
BIAS_ROW = K_REAL                # x lane / wenc row carrying the folded bias
K_PAD = 56                       # 48 features + 1 bias lane, padded to mult-of-8
B_PAD = 8                        # padded batch rows (sublane multiple)
BS_PAD = 64                      # padded batch*seq rows (4*15 = 60 -> 64)
OUT_LANES = 128                  # lane-dense output width
N_STATS = 4                      # mean, lower, upper, uncertainty


# ---------------------------------------------------------------------------
# Fused kernel: all models' encoders + heads + ensemble statistics.
# ---------------------------------------------------------------------------
def _ensemble_kernel(x_ref, pool_ref, wenc_ref, whead_ref, bo_ref, out_ref):
    x = x_ref[...]            # (BS_PAD, K_PAD)  bf16; lane BIAS_ROW == 1.0
    pool = pool_ref[...]      # (B_PAD, BS_PAD)  f32 per-batch mean-pool matrix

    preds = []
    for m in range(N_MODELS):     # static unroll; keeps live vregs well < 64
        lo = m * CH
        # One bf16 MXU pass covers all three horizon encoders of model m
        # (block-diagonal weights; encoder bias folded in via the 1.0 lane).
        h = jnp.tanh(jnp.dot(x, wenc_ref[:, lo:lo + CH],
                             preferred_element_type=jnp.float32))    # (BS_PAD, CH) f32
        # Seq mean-pool folded into a matmul (no in-kernel reshapes).
        hp = jnp.dot(pool, h, preferred_element_type=jnp.float32)    # (B_PAD, CH) f32
        # Compact head: VPU multiply + XLU lane reduce (padding lanes are 0).
        pred = (jnp.sum(hp * whead_ref[:, lo:lo + CH],
                        axis=-1, keepdims=True)
                + bo_ref[m])                                          # (B_PAD, 1) f32
        preds.append(pred)

    n = len(preds)
    mean = preds[0]
    for p in preds[1:]:
        mean = mean + p
    mean = mean * (1.0 / n)

    # torch.std(dim=0) is unbiased (ddof = 1)
    var = (preds[0] - mean) ** 2
    for p in preds[1:]:
        var = var + (p - mean) ** 2
    unc = jnp.sqrt(var * (1.0 / (n - 1)))

    # n_models <= 3 branch of EnsembleModel: sorted[0] / sorted[-1] == min / max
    lower = preds[0]
    upper = preds[0]
    for p in preds[1:]:
        lower = jnp.minimum(lower, p)
        upper = jnp.maximum(upper, p)

    # Lane-dense stores (full-lane vst), wrapper slices [:, 0:1].
    out_ref[0] = jnp.broadcast_to(mean, (B_PAD, OUT_LANES))
    out_ref[1] = jnp.broadcast_to(lower, (B_PAD, OUT_LANES))
    out_ref[2] = jnp.broadcast_to(upper, (B_PAD, OUT_LANES))
    out_ref[3] = jnp.broadcast_to(unc, (B_PAD, OUT_LANES))


# ---------------------------------------------------------------------------
# Parameter init (deterministic, in-script) and compact packing.
# ---------------------------------------------------------------------------
def init_model_params(key, feature_dim, hidden_dim):
    ks = jax.random.split(key, 10)

    def lin(k, fan_in, fan_out):
        scale = 1.0 / jnp.sqrt(jnp.float32(fan_in))
        return jax.random.uniform(k, (fan_in, fan_out), jnp.float32, -scale, scale)

    ws = lin(ks[0], feature_dim, hidden_dim)
    bs = 0.05 * jax.random.normal(ks[1], (1, hidden_dim), jnp.float32)
    wm = lin(ks[2], feature_dim, hidden_dim)
    bm = 0.05 * jax.random.normal(ks[3], (1, hidden_dim), jnp.float32)
    wl = lin(ks[4], feature_dim, hidden_dim)
    bl = 0.05 * jax.random.normal(ks[5], (1, hidden_dim), jnp.float32)
    wos = lin(ks[6], hidden_dim, 1)
    wom = lin(ks[7], hidden_dim, 1)
    wol = lin(ks[8], hidden_dim, 1)
    bo = 0.05 * jax.random.normal(ks[9], (1, 1), jnp.float32)
    return (ws, bs, wm, bm, wl, bl, wos, wom, wol, bo)


def pack_params(all_params):
    """Pack per-model params into compact, lane-aligned slabs (done once).

    Returns:
      wenc  : (K_PAD, W_ALL)  bf16  merged block-diag encoder weights; row
              BIAS_ROW holds the encoder biases (bias trick).
      whead : (1, W_ALL)      f32   compact head weights (one row).
      bo    : (N_MODELS,)     f32   head biases (SMEM scalars).
    """
    wenc = jnp.zeros((K_PAD, W_ALL), jnp.float32)
    whead = jnp.zeros((1, W_ALL), jnp.float32)
    bo_all = []
    for m, (ws, bs, wm, bm, wl, bl, wos, wom, wol, bo) in enumerate(all_params):
        f, h = ws.shape
        for j, (w, b, wo) in enumerate(((ws, bs, wos), (wm, bm, wom), (wl, bl, wol))):
            r0 = j * FEATURE_DIM
            c0 = m * CH + j * H_PAD
            wenc = wenc.at[r0:r0 + f, c0:c0 + h].set(w)
            wenc = wenc.at[BIAS_ROW, c0:c0 + h].set(b[0])
            whead = whead.at[0, c0:c0 + h].set(wo[:, 0])
        bo_all.append(bo[0, 0])
    return (wenc.astype(jnp.bfloat16),
            whead,
            jnp.stack(bo_all).astype(jnp.float32))


def pack_inputs(X_short, X_med, X_long):
    """Concat horizons on the feature axis, add the 1.0 bias lane, cast bf16."""
    B, S, F = X_short.shape
    x_cat = jnp.concatenate([X_short, X_med, X_long], axis=-1).reshape(B * S, 3 * F)
    x = jnp.zeros((BS_PAD, K_PAD), jnp.float32)
    x = x.at[:B * S, :3 * F].set(x_cat)
    x = x.at[:, BIAS_ROW].set(1.0)
    return x.astype(jnp.bfloat16)


def _pooling_matrix(B, S):
    """(B_PAD, BS_PAD) matrix: row b holds 1/S at its own valid seq positions."""
    rows = jnp.arange(B_PAD, dtype=jnp.int32)[:, None]
    cols = jnp.arange(BS_PAD, dtype=jnp.int32)[None, :]
    valid = ((rows < B) & (cols >= rows * S)
             & (cols < (rows + 1) * S) & (cols < B * S))
    return jnp.where(valid, jnp.float32(1.0 / S), jnp.float32(0.0))


# ---------------------------------------------------------------------------
# Ensemble forward: one fused, grid-free pallas_call.
# ---------------------------------------------------------------------------
def _pallas_forward(x, pool, packed_params):
    wenc, whead, bo = packed_params
    return pl.pallas_call(
        _ensemble_kernel,
        out_shape=jax.ShapeDtypeStruct((N_STATS, B_PAD, OUT_LANES), jnp.float32),
        in_specs=[
            pl.BlockSpec(memory_space=pltpu.MemorySpace.VMEM),   # x  (64, 56) bf16
            pl.BlockSpec(memory_space=pltpu.MemorySpace.VMEM),   # pool (8, 64) f32
            pl.BlockSpec(memory_space=pltpu.MemorySpace.VMEM),   # wenc (56, 1152) bf16
            pl.BlockSpec(memory_space=pltpu.MemorySpace.VMEM),   # whead (1, 1152) f32
            pl.BlockSpec(memory_space=pltpu.MemorySpace.SMEM),   # bo (3,) f32 scalars
        ],
        out_specs=pl.BlockSpec(memory_space=pltpu.MemorySpace.VMEM),
    )(x, pool, wenc, whead, bo)


def ensemble_forward_packed(x, pool, packed_params, batch):
    """For callers that pre-pack x/pool upstream (forward == one custom call)."""
    out = _pallas_forward(x, pool, packed_params)
    return (out[0, :batch, 0:1], out[1, :batch, 0:1],
            out[2, :batch, 0:1], out[3, :batch, 0:1])


@jax.jit
def ensemble_forward(X_short, X_med, X_long, packed_params):
    B, S, _ = X_short.shape
    x = pack_inputs(X_short, X_med, X_long)
    pool = _pooling_matrix(B, S)
    return ensemble_forward_packed(x, pool, packed_params, B)


# ---------------------------------------------------------------------------
# Pure-JAX f32 reference (unpadded, unfused) for correctness checking.
# ---------------------------------------------------------------------------
def _reference_forward(X_short, X_med, X_long, all_params):
    preds = []
    for (ws, bs, wm, bm, wl, bl, wos, wom, wol, bo) in all_params:
        hs = jnp.tanh(X_short @ ws + bs).mean(axis=1)
        hm = jnp.tanh(X_med @ wm + bm).mean(axis=1)
        hl = jnp.tanh(X_long @ wl + bl).mean(axis=1)
        preds.append(hs @ wos + hm @ wom + hl @ wol + bo)
    p = jnp.stack(preds, axis=0)
    mean = p.mean(axis=0)
    unc = p.std(axis=0, ddof=1)
    return mean, p.min(axis=0), p.max(axis=0), unc


if __name__ == "__main__":
    key = jax.random.PRNGKey(0)
    kx, kp = jax.random.split(key)
    kxs, kxm, kxl = jax.random.split(kx, 3)

    X_short = jax.random.normal(kxs, (BATCH, SEQ_LEN, FEATURE_DIM), jnp.float32)
    X_med = jax.random.normal(kxm, (BATCH, SEQ_LEN, FEATURE_DIM), jnp.float32)
    X_long = jax.random.normal(kxl, (BATCH, SEQ_LEN, FEATURE_DIM), jnp.float32)

    all_params = [
        init_model_params(jax.random.fold_in(kp, i),
                          FEATURE_DIM,
                          HIDDEN_DIMS[i % len(HIDDEN_DIMS)])
        for i in range(N_MODELS)
    ]
    packed = pack_params(all_params)   # packed once, reused every forward

    outs = ensemble_forward(X_short, X_med, X_long, packed)
    jax.block_until_ready(outs)

    mean_pred, lower_bound, upper_bound, uncertainty = outs
    assert mean_pred.shape == (BATCH, 1)
    assert lower_bound.shape == (BATCH, 1)
    assert upper_bound.shape == (BATCH, 1)
    assert uncertainty.shape == (BATCH, 1)

    ref = _reference_forward(X_short, X_med, X_long, all_params)
    for got, want in zip(outs, ref):
        assert jnp.allclose(got, want, rtol=2e-2, atol=2e-2), (got, want)
    assert bool(jnp.all(lower_bound <= upper_bound))
    assert bool(jnp.all(uncertainty >= 0))

    print("KERNEL_OK")
</pallas_src>

<mosaic_0001>
module attributes {stable_mosaic.version = 11 : i64} {
  func.func @_ensemble_kernel(%arg0: memref<64x56xbf16, #tpu.memory_space<vmem>>, %arg1: memref<8x64xf32, #tpu.memory_space<vmem>>, %arg2: memref<56x1152xbf16, #tpu.memory_space<vmem>>, %arg3: memref<1x1152xf32, #tpu.memory_space<vmem>>, %arg4: memref<3xf32, #tpu.memory_space<smem>>, %arg5: memref<4x8x128xf32, #tpu.memory_space<vmem>>) attributes {dimension_semantics = [], scalar_prefetch = 0 : i64, scratch_operands = 0 : i64, tpu.core_type = #tpu.core_type<tc>} {
    %c0 = arith.constant 0 : index
    %c0_0 = arith.constant 0 : index
    %0 = vector.load %arg0[%c0, %c0_0] : memref<64x56xbf16, #tpu.memory_space<vmem>>, vector<64x56xbf16>
    %c0_1 = arith.constant 0 : index
    %c0_2 = arith.constant 0 : index
    %1 = vector.load %arg1[%c0_1, %c0_2] : memref<8x64xf32, #tpu.memory_space<vmem>>, vector<8x64xf32>
    %c0_3 = arith.constant 0 : index
    %c0_4 = arith.constant 0 : index
    %2 = vector.load %arg2[%c0_3, %c0_4] : memref<56x1152xbf16, #tpu.memory_space<vmem>>, vector<56x384xbf16>
    %cst = arith.constant dense<0.000000e+00> : vector<64x384xf32>
    %3 = tpu.matmul %0, %2, %cst {dimension_numbers = #tpu.dot_dimension_numbers<[1], [0], [0], [1], [0, 0, 1, 1], [], []>} : vector<64x56xbf16>, vector<56x384xbf16>, vector<64x384xf32> -> vector<64x384xf32>
    %4 = math.tanh %3 : vector<64x384xf32>
    %cst_5 = arith.constant dense<0.000000e+00> : vector<8x384xf32>
    %5 = tpu.matmul %1, %4, %cst_5 {dimension_numbers = #tpu.dot_dimension_numbers<[1], [0], [0], [1], [0, 0, 1, 1], [], []>} : vector<8x64xf32>, vector<64x384xf32>, vector<8x384xf32> -> vector<8x384xf32>
    %c0_6 = arith.constant 0 : index
    %c0_7 = arith.constant 0 : index
    %6 = vector.load %arg3[%c0_6, %c0_7] : memref<1x1152xf32, #tpu.memory_space<vmem>>, vector<1x384xf32>
    %7 = vector.broadcast %6 : vector<1x384xf32> to vector<8x384xf32>
    %8 = arith.mulf %5, %7 : vector<8x384xf32>
    %cst_8 = arith.constant dense<0.000000e+00> : vector<8xf32>
    %9 = vector.multi_reduction <add>, %8, %cst_8 [1] : vector<8x384xf32> to vector<8xf32>
    %10 = vector.shape_cast %9 : vector<8xf32> to vector<8x1xf32>
    %c0_9 = arith.constant 0 : index
    %11 = memref.load %arg4[%c0_9] : memref<3xf32, #tpu.memory_space<smem>>
    %12 = vector.broadcast %11 : f32 to vector<8x1xf32>
    %13 = arith.addf %10, %12 : vector<8x1xf32>
    %c0_10 = arith.constant 0 : index
    %c384 = arith.constant 384 : index
    %14 = vector.load %arg2[%c0_10, %c384] : memref<56x1152xbf16, #tpu.memory_space<vmem>>, vector<56x384xbf16>
    %cst_11 = arith.constant dense<0.000000e+00> : vector<64x384xf32>
    %15 = tpu.matmul %0, %14, %cst_11 {dimension_numbers = #tpu.dot_dimension_numbers<[1], [0], [0], [1], [0, 0, 1, 1], [], []>} : vector<64x56xbf16>, vector<56x384xbf16>, vector<64x384xf32> -> vector<64x384xf32>
    %16 = math.tanh %15 : vector<64x384xf32>
    %cst_12 = arith.constant dense<0.000000e+00> : vector<8x384xf32>
    %17 = tpu.matmul %1, %16, %cst_12 {dimension_numbers = #tpu.dot_dimension_numbers<[1], [0], [0], [1], [0, 0, 1, 1], [], []>} : vector<8x64xf32>, vector<64x384xf32>, vector<8x384xf32> -> vector<8x384xf32>
    %c0_13 = arith.constant 0 : index
    %c384_14 = arith.constant 384 : index
    %18 = vector.load %arg3[%c0_13, %c384_14] : memref<1x1152xf32, #tpu.memory_space<vmem>>, vector<1x384xf32>
    %19 = vector.broadcast %18 : vector<1x384xf32> to vector<8x384xf32>
    %20 = arith.mulf %17, %19 : vector<8x384xf32>
    %cst_15 = arith.constant dense<0.000000e+00> : vector<8xf32>
    %21 = vector.multi_reduction <add>, %20, %cst_15 [1] : vector<8x384xf32> to vector<8xf32>
    %22 = vector.shape_cast %21 : vector<8xf32> to vector<8x1xf32>
    %c1 = arith.constant 1 : index
    %23 = memref.load %arg4[%c1] : memref<3xf32, #tpu.memory_space<smem>>
    %24 = vector.broadcast %23 : f32 to vector<8x1xf32>
    %25 = arith.addf %22, %24 : vector<8x1xf32>
    %c0_16 = arith.constant 0 : index
    %c768 = arith.constant 768 : index
    %26 = vector.load %arg2[%c0_16, %c768] : memref<56x1152xbf16, #tpu.memory_space<vmem>>, vector<56x384xbf16>
    %cst_17 = arith.constant dense<0.000000e+00> : vector<64x384xf32>
    %27 = tpu.matmul %0, %26, %cst_17 {dimension_numbers = #tpu.dot_dimension_numbers<[1], [0], [0], [1], [0, 0, 1, 1], [], []>} : vector<64x56xbf16>, vector<56x384xbf16>, vector<64x384xf32> -> vector<64x384xf32>
    %28 = math.tanh %27 : vector<64x384xf32>
    %cst_18 = arith.constant dense<0.000000e+00> : vector<8x384xf32>
    %29 = tpu.matmul %1, %28, %cst_18 {dimension_numbers = #tpu.dot_dimension_numbers<[1], [0], [0], [1], [0, 0, 1, 1], [], []>} : vector<8x64xf32>, vector<64x384xf32>, vector<8x384xf32> -> vector<8x384xf32>
    %c0_19 = arith.constant 0 : index
    %c768_20 = arith.constant 768 : index
    %30 = vector.load %arg3[%c0_19, %c768_20] : memref<1x1152xf32, #tpu.memory_space<vmem>>, vector<1x384xf32>
    %31 = vector.broadcast %30 : vector<1x384xf32> to vector<8x384xf32>
    %32 = arith.mulf %29, %31 : vector<8x384xf32>
    %cst_21 = arith.constant dense<0.000000e+00> : vector<8xf32>
    %33 = vector.multi_reduction <add>, %32, %cst_21 [1] : vector<8x384xf32> to vector<8xf32>
    %34 = vector.shape_cast %33 : vector<8xf32> to vector<8x1xf32>
    %c2 = arith.constant 2 : index
    %35 = memref.load %arg4[%c2] : memref<3xf32, #tpu.memory_space<smem>>
    %36 = vector.broadcast %35 : f32 to vector<8x1xf32>
    %37 = arith.addf %34, %36 : vector<8x1xf32>
    %38 = arith.addf %13, %25 : vector<8x1xf32>
    %39 = arith.addf %38, %37 : vector<8x1xf32>
    %cst_22 = arith.constant 0.333333343 : f32
    %40 = vector.broadcast %cst_22 : f32 to vector<8x1xf32>
    %41 = arith.mulf %39, %40 : vector<8x1xf32>
    %42 = arith.subf %13, %41 : vector<8x1xf32>
    %43 = arith.mulf %42, %42 : vector<8x1xf32>
    %44 = arith.subf %25, %41 : vector<8x1xf32>
    %45 = arith.mulf %44, %44 : vector<8x1xf32>
    %46 = arith.addf %43, %45 : vector<8x1xf32>
    %47 = arith.subf %37, %41 : vector<8x1xf32>
    %48 = arith.mulf %47, %47 : vector<8x1xf32>
    %49 = arith.addf %46, %48 : vector<8x1xf32>
    %cst_23 = arith.constant 5.000000e-01 : f32
    %50 = vector.broadcast %cst_23 : f32 to vector<8x1xf32>
    %51 = arith.mulf %49, %50 : vector<8x1xf32>
    %52 = math.sqrt %51 : vector<8x1xf32>
    %53 = arith.minimumf %13, %25 : vector<8x1xf32>
    %54 = arith.maximumf %13, %25 : vector<8x1xf32>
    %55 = arith.minimumf %53, %37 : vector<8x1xf32>
    %56 = arith.maximumf %54, %37 : vector<8x1xf32>
    %57 = vector.shape_cast %41 : vector<8x1xf32> to vector<8x1xf32>
    %58 = vector.broadcast %57 : vector<8x1xf32> to vector<8x128xf32>
    %c0_24 = arith.constant 0 : index
    %c0_25 = arith.constant 0 : index
    %c0_26 = arith.constant 0 : index
    %59 = vector.load %arg5[%c0_24, %c0_25, %c0_26] : memref<4x8x128xf32, #tpu.memory_space<vmem>>, vector<1x8x128xf32>
    %60 = vector.shape_cast %59 : vector<1x8x128xf32> to vector<8x128xf32>
    %61 = vector.shape_cast %58 : vector<8x128xf32> to vector<1x8x128xf32>
    tpu.vector_store %arg5[%c0_24, %c0_25, %c0_26], %61 {strides = array<i32>} : memref<4x8x128xf32, #tpu.memory_space<vmem>>, vector<1x8x128xf32>,
    %62 = vector.shape_cast %55 : vector<8x1xf32> to vector<8x1xf32>
    %63 = vector.broadcast %62 : vector<8x1xf32> to vector<8x128xf32>
    %c1_27 = arith.constant 1 : index
    %c0_28 = arith.constant 0 : index
    %c0_29 = arith.constant 0 : index
    %64 = vector.load %arg5[%c1_27, %c0_28, %c0_29] : memref<4x8x128xf32, #tpu.memory_space<vmem>>, vector<1x8x128xf32>
    %65 = vector.shape_cast %64 : vector<1x8x128xf32> to vector<8x128xf32>
    %66 = vector.shape_cast %63 : vector<8x128xf32> to vector<1x8x128xf32>
    tpu.vector_store %arg5[%c1_27, %c0_28, %c0_29], %66 {strides = array<i32>} : memref<4x8x128xf32, #tpu.memory_space<vmem>>, vector<1x8x128xf32>,
    %67 = vector.shape_cast %56 : vector<8x1xf32> to vector<8x1xf32>
    %68 = vector.broadcast %67 : vector<8x1xf32> to vector<8x128xf32>
    %c2_30 = arith.constant 2 : index
    %c0_31 = arith.constant 0 : index
    %c0_32 = arith.constant 0 : index
    %69 = vector.load %arg5[%c2_30, %c0_31, %c0_32] : memref<4x8x128xf32, #tpu.memory_space<vmem>>, vector<1x8x128xf32>
    %70 = vector.shape_cast %69 : vector<1x8x128xf32> to vector<8x128xf32>
    %71 = vector.shape_cast %68 : vector<8x128xf32> to vector<1x8x128xf32>
    tpu.vector_store %arg5[%c2_30, %c0_31, %c0_32], %71 {strides = array<i32>} : memref<4x8x128xf32, #tpu.memory_space<vmem>>, vector<1x8x128xf32>,
    %72 = vector.shape_cast %52 : vector<8x1xf32> to vector<8x1xf32>
    %73 = vector.broadcast %72 : vector<8x1xf32> to vector<8x128xf32>
    %c3 = arith.constant 3 : index
    %c0_33 = arith.constant 0 : index
    %c0_34 = arith.constant 0 : index
    %74 = vector.load %arg5[%c3, %c0_33, %c0_34] : memref<4x8x128xf32, #tpu.memory_space<vmem>>, vector<1x8x128xf32>
    %75 = vector.shape_cast %74 : vector<1x8x128xf32> to vector<8x128xf32>
    %76 = vector.shape_cast %73 : vector<8x128xf32> to vector<1x8x128xf32>
    tpu.vector_store %arg5[%c3, %c0_33, %c0_34], %76 {strides = array<i32>} : memref<4x8x128xf32, #tpu.memory_space<vmem>>, vector<1x8x128xf32>,
    return
  }
}

</mosaic_0001>

<llo_original>
// kernel: ensemble_forward.1
$region0: #{ensemble_forward.1}
  #allocation0 [shape = 'u32[]', space=smem, size = 0x4, offset = 0x4, fixed_abs, tag = 'smem constant byte address 0x4 - core index']
  #allocation1 [shape = 'u32[144,128]{1,0:T(1,128)}', space=vmem, size = 0x12000, scoped, tag = 'internal scratch']
  %s0 = inlined_call_operand.vmem [shape: bf16[64,56], index: 0, kind: input, shape index: {}]
  %s1 = inlined_call_operand.vmem [shape: f32[8,64], index: 1, kind: input, shape index: {}]
  %s2 = inlined_call_operand.vmem [shape: bf16[56,1152], index: 2, kind: input, shape index: {}]
  %s3 = inlined_call_operand.vmem [shape: f32[1,1152], index: 3, kind: input, shape index: {}]
  %s4 = inlined_call_operand.vmem [shape: f32[3], index: 4, kind: input, shape index: {}]
  %s5 = inlined_call_operand.vmem [shape: f32[4,8,128], index: 5, kind: output, shape index: {}]
  %s6 = sld [smem:[#allocation0]]
  $region34: #{ensemble_forward.1} parent=0
    _
  %s8 = ssub.s32 1, %s6
  %s9 = scalar_select 0, %s8, %s6
  $region1: #{ensemble_forward.1} parent=0
    #allocation2 [shape = 'u8[512]{0}', space=smem, size = 0x200, scoped, tag = 'input window, operand 4, single buffered']
    #allocation3 [shape = 's32[1]{0}', space=sflag, size = 0x4, scoped, tag = 'scoped memory for ensemble_forward.1']
    %10 = vsyncpa [#allocation3], 0
    // Predicated region
    $region2: #{ensemble_forward.1} parent=1 // pred_check
      _
    $region3: #{ensemble_forward.1} parent=1 // pred_check_branch
      %12 = sbr.rel (0) target = $region5
    $region4: #{ensemble_forward.1} parent=1 // pred_region
      _
    $region5: #{ensemble_forward.1} parent=1 // pred_fallthru
      _
    // Predicated region
    $region6: #{ensemble_forward.1} parent=1 // pred_check
      _
    $region7: #{ensemble_forward.1} parent=1 // pred_check_branch
      %14 = sbr.rel (0) target = $region9
    $region8: #{ensemble_forward.1} parent=1 // pred_region
      _
    $region9: #{ensemble_forward.1} parent=1 // pred_fallthru
      _
    // Predicated region
    $region10: #{ensemble_forward.1} parent=1 // pred_check
      _
    $region11: #{ensemble_forward.1} parent=1 // pred_check_branch
      %16 = sbr.rel (0) target = $region13
    $region12: #{ensemble_forward.1} parent=1 // pred_region
      _
    $region13: #{ensemble_forward.1} parent=1 // pred_fallthru
      _
    // Predicated region
    $region14: #{ensemble_forward.1} parent=1 // pred_check
      _
    $region15: #{ensemble_forward.1} parent=1 // pred_check_branch
      %18 = sbr.rel (0) target = $region17
    $region16: #{ensemble_forward.1} parent=1 // pred_region
      _
    $region17: #{ensemble_forward.1} parent=1 // pred_fallthru
      _
    // Predicated region
    $region18: #{ensemble_forward.1} parent=1 // pred_check
      _
    $region19: #{ensemble_forward.1} parent=1 // pred_check_branch
      %20 = sbr.rel (0) target = $region21
    $region20: #{ensemble_forward.1} parent=1 // pred_region
      %s22 = ssub.s32 16, 16
      %23 = vsyncadd [#allocation3], %s22
      %s25 = sshll.u32 %s4, 4
      %s26 = int_to_ptr.vmem [resolvable:$true] %s25
      %28 = dma.vmem_to_smem %s26, 16, [#allocation2], [#allocation3]
    $region21: #{ensemble_forward.1} parent=1 // pred_fallthru
      _
    // Predicated region
    $region22: #{ensemble_forward.1} parent=1 // pred_check
      _
    $region23: #{ensemble_forward.1} parent=1 // pred_check_branch
      %30 = sbr.rel (0) target = $region25
    $region24: #{ensemble_forward.1} parent=1 // pred_region
      %31 = dma.done [#allocation3], 16
    $region25: #{ensemble_forward.1} parent=1 // pred_fallthru
      _
    %32 = sfence
    %v34 = vld [vmem:[%s0] sm:$0xf]
    %v35 = vld [vmem:[%s0 + $0x4] sm:$0xf]
    %v36 = vld [vmem:[%s0 + $0x8] sm:$0xf]
    %v37 = vld [vmem:[%s0 + $0xc] sm:$0xf]
    %v38 = vld [vmem:[%s0 + $0x10] sm:$0xf]
    %v39 = vld [vmem:[%s0 + $0x14] sm:$0xf]
    %v40 = vld [vmem:[%s0 + $0x18] sm:$0xf]
    %v41 = vld [vmem:[%s0 + $0x1c] sm:$0xf]
    %v42 = vld [vmem:[%s1] sm:$0xff]
    %v43 = vld [vmem:[%s2] sm:$0xff]
    %v44 = vld [vmem:[%s2 + $0x8] sm:$0xf]
    %v45 = vld [vmem:[%s2 + $0x24] sm:$0xff]
    %v46 = vld [vmem:[%s2 + $0x2c] sm:$0xf]
    %v47 = vld [vmem:[%s2 + $0x48] sm:$0xff]
    %v48 = vld [vmem:[%s2 + $0x50] sm:$0xf]
    %v49 = vld [vmem:[%s2 + $0x6c] sm:$0xff]
    %v50 = vld [vmem:[%s2 + $0x74] sm:$0xf]
    %v51 = vld [vmem:[%s2 + $0x90] sm:$0xff]
    %v52 = vld [vmem:[%s2 + $0x98] sm:$0xf]
    %v53 = vld [vmem:[%s2 + $0xb4] sm:$0xff]
    %v54 = vld [vmem:[%s2 + $0xbc] sm:$0xf]
    %v55 = vld [vmem:[%s2 + $0xd8] sm:$0xff]
    %v56 = vld [vmem:[%s2 + $0xe0] sm:$0xf]
    %v65 = vunpack.c.l.b16 %v34
    %v66 = vunpack.c.l.b16 %v35
    %v67 = vunpack.c.l.b16 %v36
    %v68 = vunpack.c.l.b16 %v37
    %v69 = vunpack.c.l.b16 %v38
    %v70 = vunpack.c.l.b16 %v39
    %v71 = vunpack.c.l.b16 %v40
    %v72 = vunpack.c.l.b16 %v41
    %v73 = vpack.c.b16 %v66, %v65
    %v74 = vpack.c.b16 %v68, %v67
    %v75 = vpack.c.b16 %v70, %v69
    %v76 = vpack.c.b16 %v72, %v71
    %v91 = vunpack.c.l.b16 %v43
    %v92 = vunpack.c.h.b16 %v43
    %v93 = vunpack.c.l.b16 %v44
    %v94 = vunpack.c.l.b16 %v45
    %v95 = vunpack.c.h.b16 %v45
    %v96 = vunpack.c.l.b16 %v46
    %v97 = vunpack.c.l.b16 %v47
    %v98 = vunpack.c.h.b16 %v47
    %v99 = vunpack.c.l.b16 %v48
    %v100 = vunpack.c.l.b16 %v49
    %v101 = vunpack.c.h.b16 %v49
    %v102 = vunpack.c.l.b16 %v50
    %v103 = vunpack.c.l.b16 %v51
    %v104 = vunpack.c.h.b16 %v51
    %v105 = vunpack.c.l.b16 %v52
    %v106 = vunpack.c.l.b16 %v53
    %v107 = vunpack.c.h.b16 %v53
    %v108 = vunpack.c.l.b16 %v54
    %v109 = vunpack.c.l.b16 %v55
    %v110 = vunpack.c.h.b16 %v55
    %v111 = vunpack.c.l.b16 %v56
    %v112 = vpack.c.b16 %v94, %v91
    %v113 = vpack.c.b16 %v95, %v92
    %v114 = vpack.c.b16 %v96, %v93
    %v115 = vpack.c.b16 %v100, %v97
    %v116 = vpack.c.b16 %v101, %v98
    %v117 = vpack.c.b16 %v102, %v99
    %v118 = vpack.c.b16 %v106, %v103
    %v119 = vpack.c.b16 %v107, %v104
    %v120 = vpack.c.b16 %v108, %v105
    %v121 = vpack.c.b16 %v109, %v109
    %v122 = vpack.c.b16 %v110, %v110
    %v123 = vpack.c.b16 %v111, %v111
    %vm133 = vcmask 457728
    %v135 = vsel %vm133, %v73, 0
    %v138 = vsel %vm133, %v74, 0
    %v141 = vsel %vm133, %v75, 0
    %v144 = vsel %vm133, %v76, 0
    %vm146 = vcmask 1043456
    %v148 = vsel %vm146, %v121, 0
    %v151 = vsel %vm146, %v122, 0
    %v154 = vsel %vm146, %v123, 0
    %156 = vmatprep.subr.bf16.mxu0 %v113
    %157 = vmatpush1.bf16.msra.mxu0 %v112
    %158 = vmatprep.subr.bf16.mxu0 %v116
    %159 = vmatpush1.bf16.msra.mxu0 %v115
    %160 = vmatprep.subr.bf16.mxu0 %v119
    %161 = vmatpush1.bf16.msra.mxu0 %v118
    %162 = vmatprep.subr.bf16.mxu0 %v151
    %163 = vmatpush1.bf16.msra.mxu0 %v148
    %164 = vmatprep.subr.bf16.mxu0 0
    %165 = vmatpush1.bf16.msra.mxu0 0
    %166 = vmatprep.subr.bf16.mxu0 0
    %167 = vmatpush1.bf16.msra.mxu0 0
    %168 = vmatprep.subr.bf16.mxu0 0
    %169 = vmatpush1.bf16.msra.mxu0 0
    %170 = vmatprep.subr.bf16.mxu0 0
    %171 = vmatpush1.bf16.msra.mxu0 0
    %172 = vmatprep.subr.bf16.mxu0 0
    %173 = vmatpush1.bf16.msra.mxu0 0
    %174 = vmatprep.subr.bf16.mxu0 0
    %175 = vmatpush1.bf16.msra.mxu0 0
    %176 = vmatprep.subr.bf16.mxu0 0
    %177 = vmatpush1.bf16.msra.mxu0 0
    %178 = vmatprep.subr.bf16.mxu0 0
    %179 = vmatpush1.bf16.msra.mxu0 0
    %180 = vmatprep.subr.bf16.mxu0 0
    %181 = vmatpush1.bf16.msra.mxu0 0
    %182 = vmatprep.subr.bf16.mxu0 0
    %183 = vmatpush1.bf16.msra.mxu0 0
    %184 = vmatprep.subr.bf16.mxu0 0
    %185 = vmatpush1.bf16.msra.mxu0 0
    %186 = vmatprep.subr.bf16.mxu0 0
    %187 = vmatpush1.bf16.msra.mxu0 0
    %188 = vmatprep.mubr.bf16.mxu0 0
    %189 = vmatmul.mubr.bf16.gmra.mrb[0].mxu0 %v135
    %v190 = vpop.f32.mrb[0].mxu0
    %v191 = vadd.f32 0.0, %v190
    %v192 = vpop.f32.mrb[0].mxu0
    %v193 = vadd.f32 0.0, %v192
    %v194 = vpop.f32.mrb[0].mxu0
    %v195 = vadd.f32 0.0, %v194
    %v196 = vpop.f32.mrb[0].mxu0
    %v197 = vadd.f32 0.0, %v196
    %198 = vmatprep.mubr.bf16.mxu0 0
    %199 = vmatmul.mubr.bf16.gmra.mrb[0].mxu0 %v138
    %v200 = vpop.f32.mrb[0].mxu0
    %v201 = vadd.f32 0.0, %v200
    %v202 = vpop.f32.mrb[0].mxu0
    %v203 = vadd.f32 0.0, %v202
    %v204 = vpop.f32.mrb[0].mxu0
    %v205 = vadd.f32 0.0, %v204
    %v206 = vpop.f32.mrb[0].mxu0
    %v207 = vadd.f32 0.0, %v206
    %208 = vmatprep.mubr.bf16.mxu0 0
    %209 = vmatmul.mubr.bf16.gmra.mrb[0].mxu0 %v141
    %v210 = vpop.f32.mrb[0].mxu0
    %v211 = vadd.f32 0.0, %v210
    %v212 = vpop.f32.mrb[0].mxu0
    %v213 = vadd.f32 0.0, %v212
    %v214 = vpop.f32.mrb[0].mxu0
    %v215 = vadd.f32 0.0, %v214
    %v216 = vpop.f32.mrb[0].mxu0
    %v217 = vadd.f32 0.0, %v216
    %218 = vmatprep.mubr.bf16.mxu0 0
    %219 = vmatmul.mubr.bf16.gmra.mrb[0].mxu0 %v144
    %v220 = vpop.f32.mrb[0].mxu0
    %v221 = vadd.f32 0.0, %v220
    %v222 = vpop.f32.mrb[0].mxu0
    %v223 = vadd.f32 0.0, %v222
    %v224 = vpop.f32.mrb[0].mxu0
    %v225 = vadd.f32 0.0, %v224
    %v226 = vpop.f32.mrb[0].mxu0
    %v227 = vadd.f32 0.0, %v226
    %228 = vdwg.mxu0
    %229 = vmatprep.subr.bf16.mxu0 0
    %230 = vmatpush1.bf16.msra.mxu0 %v114
    %231 = vmatprep.subr.bf16.mxu0 0
    %232 = vmatpush1.bf16.msra.mxu0 %v117
    %233 = vmatprep.subr.bf16.mxu0 0
    %234 = vmatpush1.bf16.msra.mxu0 %v120
    %235 = vmatprep.subr.bf16.mxu0 0
    %236 = vmatpush1.bf16.msra.mxu0 %v154
    %237 = vmatprep.subr.bf16.mxu0 0
    %238 = vmatpush1.bf16.msra.mxu0 0
    %239 = vmatprep.subr.bf16.mxu0 0
    %240 = vmatpush1.bf16.msra.mxu0 0
    %241 = vmatprep.subr.bf16.mxu0 0
    %242 = vmatpush1.bf16.msra.mxu0 0
    %243 = vmatprep.subr.bf16.mxu0 0
    %244 = vmatpush1.bf16.msra.mxu0 0
    %245 = vmatprep.subr.bf16.mxu0 0
    %246 = vmatpush1.bf16.msra.mxu0 0
    %247 = vmatprep.subr.bf16.mxu0 0
    %248 = vmatpush1.bf16.msra.mxu0 0
    %249 = vmatprep.subr.bf16.mxu0 0
    %250 = vmatpush1.bf16.msra.mxu0 0
    %251 = vmatprep.subr.bf16.mxu0 0
    %252 = vmatpush1.bf16.msra.mxu0 0
    %253 = vmatprep.subr.bf16.mxu0 0
    %254 = vmatpush1.bf16.msra.mxu0 0
    %255 = vmatprep.subr.bf16.mxu0 0
    %256 = vmatpush1.bf16.msra.mxu0 0
    %257 = vmatprep.subr.bf16.mxu0 0
    %258 = vmatpush1.bf16.msra.mxu0 0
    %259 = vmatprep.subr.bf16.mxu0 0
    %260 = vmatpush1.bf16.msra.mxu0 0
    %261 = vmatprep.mubr.bf16.mxu0 0
    %262 = vmatmul.mubr.bf16.gmra.mrb[0].mxu0 %v135
    %v263 = vpop.f32.mrb[0].mxu0
    %v264 = vadd.f32 0.0, %v263
    %v265 = vpop.f32.mrb[0].mxu0
    %v266 = vpop.f32.mrb[0].mxu0
    %v267 = vadd.f32 0.0, %v266
    %v268 = vpop.f32.mrb[0].mxu0
    %269 = vmatprep.mubr.bf16.mxu0 0
    %270 = vmatmul.mubr.bf16.gmra.mrb[0].mxu0 %v138
    %v271 = vpop.f32.mrb[0].mxu0
    %v272 = vadd.f32 0.0, %v271
    %v273 = vpop.f32.mrb[0].mxu0
    %v274 = vpop.f32.mrb[0].mxu0
    %v275 = vadd.f32 0.0, %v274
    %v276 = vpop.f32.mrb[0].mxu0
    %277 = vmatprep.mubr.bf16.mxu0 0
    %278 = vmatmul.mubr.bf16.gmra.mrb[0].mxu0 %v141
    %v279 = vpop.f32.mrb[0].mxu0
    %v280 = vadd.f32 0.0, %v279
    %v281 = vpop.f32.mrb[0].mxu0
    %v282 = vpop.f32.mrb[0].mxu0
    %v283 = vadd.f32 0.0, %v282
    %v284 = vpop.f32.mrb[0].mxu0
    %285 = vmatprep.mubr.bf16.mxu0 0
    %286 = vmatmul.mubr.bf16.gmra.mrb[0].mxu0 %v144
    %v287 = vpop.f32.mrb[0].mxu0
    %v288 = vadd.f32 0.0, %v287
    %v289 = vpop.f32.mrb[0].mxu0
    %v290 = vpop.f32.mrb[0].mxu0
    %v291 = vadd.f32 0.0, %v290
    %v292 = vpop.f32.mrb[0].mxu0
    %293 = vdwg.mxu0
    %v294 = vtanh.pop %v191
    %v295 = vtanh.pop %v193
    %v296 = vtanh.pop %v264
    %v297 = vtanh.pop %v195
    %v298 = vtanh.pop %v197
    %v299 = vtanh.pop %v267
    %v300 = vtanh.pop %v201
    %v301 = vtanh.pop %v203
    %v302 = vtanh.pop %v272
    %v303 = vtanh.pop %v205
    %v304 = vtanh.pop %v207
    %v305 = vtanh.pop %v275
    %v306 = vtanh.pop %v211
    %v307 = vtanh.pop %v213
    %v308 = vtanh.pop %v280
    %v309 = vtanh.pop %v215
    %v310 = vtanh.pop %v217
    %v311 = vtanh.pop %v283
    %v312 = vtanh.pop %v221
    %v313 = vtanh.pop %v223
    %v314 = vtanh.pop %v288
    %v315 = vtanh.pop %v225
    %v316 = vtanh.pop %v227
    %v317 = vtanh.pop %v291
    %vm318 = vcmask 523264
    %v320 = vsel %vm318, %v42, 0
    %322 = vmatprep.subr.mxu0 %v295
    %323 = vmatpush1.msra.mxu0 %v294
    %324 = vmatprep.subr.mxu0 %v298
    %325 = vmatpush1.msra.mxu0 %v297
    %326 = vmatprep.subr.mxu0 %v301
    %327 = vmatpush1.msra.mxu0 %v300
    %328 = vmatprep.subr.mxu0 %v304
    %329 = vmatpush1.msra.mxu0 %v303
    %330 = vmatprep.subr.mxu0 %v307
    %331 = vmatpush1.msra.mxu0 %v306
    %332 = vmatprep.subr.mxu0 %v310
    %333 = vmatpush1.msra.mxu0 %v309
    %334 = vmatprep.subr.mxu0 %v313
    %335 = vmatpush1.msra.mxu0 %v312
    %336 = vmatprep.subr.mxu0 %v316
    %337 = vmatpush1.msra.mxu0 %v315
    %338 = vmatprep.subr.mxu0 0.0
    %339 = vmatpush1.msra.mxu0 0.0
    %340 = vmatprep.subr.mxu0 0.0
    %341 = vmatpush1.msra.mxu0 0.0
    %342 = vmatprep.subr.mxu0 0.0
    %343 = vmatpush1.msra.mxu0 0.0
    %344 = vmatprep.subr.mxu0 0.0
    %345 = vmatpush1.msra.mxu0 0.0
    %346 = vmatprep.subr.mxu0 0.0
    %347 = vmatpush1.msra.mxu0 0.0
    %348 = vmatprep.subr.mxu0 0.0
    %349 = vmatpush1.msra.mxu0 0.0
    %350 = vmatprep.subr.mxu0 0.0
    %351 = vmatpush1.msra.mxu0 0.0
    %352 = vmatprep.subr.mxu0 0.0
    %353 = vmatpush1.msra.mxu0 0.0
    %354 = vmatprep.subr.mxu0 0.0
    %355 = vmatpush1.msra.mxu0 0.0
    %356 = vmatprep.subr.mxu0 0.0
    %357 = vmatpush1.msra.mxu0 0.0
    %358 = vmatprep.subr.mxu0 0.0
    %359 = vmatpush1.msra.mxu0 0.0
    %360 = vmatprep.subr.mxu0 0.0
    %361 = vmatpush1.msra.mxu0 0.0
    %362 = vmatprep.subr.mxu0 0.0
    %363 = vmatpush1.msra.mxu0 0.0
    %364 = vmatprep.subr.mxu0 0.0
    %365 = vmatpush1.msra.mxu0 0.0
    %366 = vmatprep.subr.mxu0 0.0
    %367 = vmatpush1.msra.mxu0 0.0
    %368 = vmatprep.subr.mxu0 0.0
    %369 = vmatpush1.msra.mxu0 0.0
    %370 = vmatprep.subr.mxu0 0.0
    %371 = vmatpush1.msra.mxu0 0.0
    %372 = vmatprep.subr.mxu0 0.0
    %373 = vmatpush1.msra.mxu0 0.0
    %374 = vmatprep.subr.mxu0 0.0
    %375 = vmatpush1.msra.mxu0 0.0
    %376 = vmatprep.subr.mxu0 0.0
    %377 = vmatpush1.msra.mxu0 0.0
    %378 = vmatprep.subr.mxu0 0.0
    %379 = vmatpush1.msra.mxu0 0.0
    %380 = vmatprep.subr.mxu0 0.0
    %381 = vmatpush1.msra.mxu0 0.0
    %382 = vmatprep.subr.mxu0 0.0
    %383 = vmatpush1.msra.mxu0 0.0
    %384 = vmatprep.subr.mxu0 0.0
    %385 = vmatpush1.msra.mxu0 0.0
    %386 = vmatprep.mubr.f32.mxu0 0.0
    %387 = vmatmul.mubr.f32.gmra.mrb[0].mxu0 %v320
    %v388 = vpop.f32.mrb[0].mxu0
    %v389 = vadd.f32 0.0, %v388
    %v390 = vpop.f32.mrb[0].mxu0
    %v391 = vadd.f32 0.0, %v390
    %392 = vdwg.mxu0
    %393 = vmatprep.subr.mxu0 0.0
    %394 = vmatpush1.msra.mxu0 %v296
    %395 = vmatprep.subr.mxu0 0.0
    %396 = vmatpush1.msra.mxu0 %v299
    %397 = vmatprep.subr.mxu0 0.0
    %398 = vmatpush1.msra.mxu0 %v302
    %399 = vmatprep.subr.mxu0 0.0
    %400 = vmatpush1.msra.mxu0 %v305
    %401 = vmatprep.subr.mxu0 0.0
    %402 = vmatpush1.msra.mxu0 %v308
    %403 = vmatprep.subr.mxu0 0.0
    %404 = vmatpush1.msra.mxu0 %v311
    %405 = vmatprep.subr.mxu0 0.0
    %406 = vmatpush1.msra.mxu0 %v314
    %407 = vmatprep.subr.mxu0 0.0
    %408 = vmatpush1.msra.mxu0 %v317
    %409 = vmatprep.subr.mxu0 0.0
    %410 = vmatpush1.msra.mxu0 0.0
    %411 = vmatprep.subr.mxu0 0.0
    %412 = vmatpush1.msra.mxu0 0.0
    %413 = vmatprep.subr.mxu0 0.0
    %414 = vmatpush1.msra.mxu0 0.0
    %415 = vmatprep.subr.mxu0 0.0
    %416 = vmatpush1.msra.mxu0 0.0
    %417 = vmatprep.subr.mxu0 0.0
    %418 = vmatpush1.msra.mxu0 0.0
    %419 = vmatprep.subr.mxu0 0.0
    %420 = vmatpush1.msra.mxu0 0.0
    %421 = vmatprep.subr.mxu0 0.0
    %422 = vmatpush1.msra.mxu0 0.0
    %423 = vmatprep.subr.mxu0 0.0
    %424 = vmatpush1.msra.mxu0 0.0
    %425 = vmatprep.subr.mxu0 0.0
    %426 = vmatpush1.msra.mxu0 0.0
    %427 = vmatprep.subr.mxu0 0.0
    %428 = vmatpush1.msra.mxu0 0.0
    %429 = vmatprep.subr.mxu0 0.0
    %430 = vmatpush1.msra.mxu0 0.0
    %431 = vmatprep.subr.mxu0 0.0
    %432 = vmatpush1.msra.mxu0 0.0
    %433 = vmatprep.subr.mxu0 0.0
    %434 = vmatpush1.msra.mxu0 0.0
    %435 = vmatprep.subr.mxu0 0.0
    %436 = vmatpush1.msra.mxu0 0.0
    %437 = vmatprep.subr.mxu0 0.0
    %438 = vmatpush1.msra.mxu0 0.0
    %439 = vmatprep.subr.mxu0 0.0
    %440 = vmatpush1.msra.mxu0 0.0
    %441 = vmatprep.subr.mxu0 0.0
    %442 = vmatpush1.msra.mxu0 0.0
    %443 = vmatprep.subr.mxu0 0.0
    %444 = vmatpush1.msra.mxu0 0.0
    %445 = vmatprep.subr.mxu0 0.0
    %446 = vmatpush1.msra.mxu0 0.0
    %447 = vmatprep.subr.mxu0 0.0
    %448 = vmatpush1.msra.mxu0 0.0
    %449 = vmatprep.subr.mxu0 0.0
    %450 = vmatpush1.msra.mxu0 0.0
    %451 = vmatprep.subr.mxu0 0.0
    %452 = vmatpush1.msra.mxu0 0.0
    %453 = vmatprep.subr.mxu0 0.0
    %454 = vmatpush1.msra.mxu0 0.0
    %455 = vmatprep.subr.mxu0 0.0
    %456 = vmatpush1.msra.mxu0 0.0
    %457 = vmatprep.mubr.f32.mxu0 0.0
    %458 = vmatmul.mubr.f32.gmra.mrb[0].mxu0 %v320
    %v459 = vpop.f32.mrb[0].mxu0
    %v460 = vadd.f32 0.0, %v459
    %v461 = vpop.f32.mrb[0].mxu0
    %462 = vdwg.mxu0
    %v463 = vld [vmem:[%s3] sm:$0x7]
    %v465 = vlaneseq
    %v466 = vshrl.u32 %v465, 7
    %v467 = vsub.s32 0, %v466
    %v468 = vrot.slane %v463, %v467
    %v469 = vlaneseq
    %v470 = vshrl.u32 %v469, 7
    %v471 = vsub.s32 1, %v470
    %v472 = vrot.slane %v463, %v471
    %v473 = vlaneseq
    %v474 = vshrl.u32 %v473, 7
    %v475 = vsub.s32 2, %v474
    %v476 = vrot.slane %v463, %v475
    %v480 = vmul.f32 %v389, %v468
    %v481 = vmul.f32 %v391, %v472
    %v482 = vmul.f32 %v460, %v476
    %v483 = vadd.f32 %v480, %v481
    %v484 = vadd.f32 %v483, %v482
    %485 = vadd.xlane.f32.xlu0 %v484
    %v486 = vpop.xlane.xlu0 %485
    %s487 = sld [smem:[#allocation2]]
    %v488 = vstv %s487
    %v489 = vadd.f32 %v486, %v488
    %v490 = vld [vmem:[%s2 + $0xc] sm:$0xff]
    %v491 = vld [vmem:[%s2 + $0x14] sm:$0xf]
    %v492 = vld [vmem:[%s2 + $0x30] sm:$0xff]
    %v493 = vld [vmem:[%s2 + $0x38] sm:$0xf]
    %v494 = vld [vmem:[%s2 + $0x54] sm:$0xff]
    %v495 = vld [vmem:[%s2 + $0x5c] sm:$0xf]
    %v496 = vld [vmem:[%s2 + $0x78] sm:$0xff]
    %v497 = vld [vmem:[%s2 + $0x80] sm:$0xf]
    %v498 = vld [vmem:[%s2 + $0x9c] sm:$0xff]
    %v499 = vld [vmem:[%s2 + $0xa4] sm:$0xf]
    %v500 = vld [vmem:[%s2 + $0xc0] sm:$0xff]
    %v501 = vld [vmem:[%s2 + $0xc8] sm:$0xf]
    %v502 = vld [vmem:[%s2 + $0xe4] sm:$0xff]
    %v503 = vld [vmem:[%s2 + $0xec] sm:$0xf]
    %v518 = vunpack.c.l.b16 %v490
    %v519 = vunpack.c.h.b16 %v490
    %v520 = vunpack.c.l.b16 %v491
    %v521 = vunpack.c.l.b16 %v492
    %v522 = vunpack.c.h.b16 %v492
    %v523 = vunpack.c.l.b16 %v493
    %v524 = vunpack.c.l.b16 %v494
    %v525 = vunpack.c.h.b16 %v494
    %v526 = vunpack.c.l.b16 %v495
    %v527 = vunpack.c.l.b16 %v496
    %v528 = vunpack.c.h.b16 %v496
    %v529 = vunpack.c.l.b16 %v497
    %v530 = vunpack.c.l.b16 %v498
    %v531 = vunpack.c.h.b16 %v498
    %v532 = vunpack.c.l.b16 %v499
    %v533 = vunpack.c.l.b16 %v500
    %v534 = vunpack.c.h.b16 %v500
    %v535 = vunpack.c.l.b16 %v501
    %v536 = vunpack.c.l.b16 %v502
    %v537 = vunpack.c.h.b16 %v502
    %v538 = vunpack.c.l.b16 %v503
    %v539 = vpack.c.b16 %v521, %v518
    %v540 = vpack.c.b16 %v522, %v519
    %v541 = vpack.c.b16 %v523, %v520
    %v542 = vpack.c.b16 %v527, %v524
    %v543 = vpack.c.b16 %v528, %v525
    %v544 = vpack.c.b16 %v529, %v526
    %v545 = vpack.c.b16 %v533, %v530
    %v546 = vpack.c.b16 %v534, %v531
    %v547 = vpack.c.b16 %v535, %v532
    %v548 = vpack.c.b16 %v536, %v536
    %v549 = vpack.c.b16 %v537, %v537
    %v550 = vpack.c.b16 %v538, %v538
    %v561 = vsel %vm146, %v548, 0
    %v564 = vsel %vm146, %v549, 0
    %v567 = vsel %vm146, %v550, 0
    %569 = vmatprep.subr.bf16.mxu0 %v540
    %570 = vmatpush1.bf16.msra.mxu0 %v539
    %571 = vmatprep.subr.bf16.mxu0 %v543
    %572 = vmatpush1.bf16.msra.mxu0 %v542
    %573 = vmatprep.subr.bf16.mxu0 %v546
    %574 = vmatpush1.bf16.msra.mxu0 %v545
    %575 = vmatprep.subr.bf16.mxu0 %v564
    %576 = vmatpush1.bf16.msra.mxu0 %v561
    %577 = vmatprep.subr.bf16.mxu0 0
    %578 = vmatpush1.bf16.msra.mxu0 0
    %579 = vmatprep.subr.bf16.mxu0 0
    %580 = vmatpush1.bf16.msra.mxu0 0
    %581 = vmatprep.subr.bf16.mxu0 0
    %582 = vmatpush1.bf16.msra.mxu0 0
    %583 = vmatprep.subr.bf16.mxu0 0
    %584 = vmatpush1.bf16.msra.mxu0 0
    %585 = vmatprep.subr.bf16.mxu0 0
    %586 = vmatpush1.bf16.msra.mxu0 0
    %587 = vmatprep.subr.bf16.mxu0 0
    %588 = vmatpush1.bf16.msra.mxu0 0
    %589 = vmatprep.subr.bf16.mxu0 0
    %590 = vmatpush1.bf16.msra.mxu0 0
    %591 = vmatprep.subr.bf16.mxu0 0
    %592 = vmatpush1.bf16.msra.mxu0 0
    %593 = vmatprep.subr.bf16.mxu0 0
    %594 = vmatpush1.bf16.msra.mxu0 0
    %595 = vmatprep.subr.bf16.mxu0 0
    %596 = vmatpush1.bf16.msra.mxu0 0
    %597 = vmatprep.subr.bf16.mxu0 0
    %598 = vmatpush1.bf16.msra.mxu0 0
    %599 = vmatprep.subr.bf16.mxu0 0
    %600 = vmatpush1.bf16.msra.mxu0 0
    %601 = vmatprep.mubr.bf16.mxu0 0
    %602 = vmatmul.mubr.bf16.gmra.mrb[0].mxu0 %v135
    %v603 = vpop.f32.mrb[0].mxu0
    %v604 = vadd.f32 0.0, %v603
    %v605 = vpop.f32.mrb[0].mxu0
    %v606 = vadd.f32 0.0, %v605
    %v607 = vpop.f32.mrb[0].mxu0
    %v608 = vadd.f32 0.0, %v607
    %v609 = vpop.f32.mrb[0].mxu0
    %v610 = vadd.f32 0.0, %v609
    %611 = vmatprep.mubr.bf16.mxu0 0
    %612 = vmatmul.mubr.bf16.gmra.mrb[0].mxu0 %v138
    %v613 = vpop.f32.mrb[0].mxu0
    %v614 = vadd.f32 0.0, %v613
    %v615 = vpop.f32.mrb[0].mxu0
    %v616 = vadd.f32 0.0, %v615
    %v617 = vpop.f32.mrb[0].mxu0
    %v618 = vadd.f32 0.0, %v617
    %v619 = vpop.f32.mrb[0].mxu0
    %v620 = vadd.f32 0.0, %v619
    %621 = vmatprep.mubr.bf16.mxu0 0
    %622 = vmatmul.mubr.bf16.gmra.mrb[0].mxu0 %v141
    %v623 = vpop.f32.mrb[0].mxu0
    %v624 = vadd.f32 0.0, %v623
    %v625 = vpop.f32.mrb[0].mxu0
    %v626 = vadd.f32 0.0, %v625
    %v627 = vpop.f32.mrb[0].mxu0
    %v628 = vadd.f32 0.0, %v627
    %v629 = vpop.f32.mrb[0].mxu0
    %v630 = vadd.f32 0.0, %v629
    %631 = vmatprep.mubr.bf16.mxu0 0
    %632 = vmatmul.mubr.bf16.gmra.mrb[0].mxu0 %v144
    %v633 = vpop.f32.mrb[0].mxu0
    %v634 = vadd.f32 0.0, %v633
    %v635 = vpop.f32.mrb[0].mxu0
    %v636 = vadd.f32 0.0, %v635
    %v637 = vpop.f32.mrb[0].mxu0
    %v638 = vadd.f32 0.0, %v637
    %v639 = vpop.f32.mrb[0].mxu0
    %v640 = vadd.f32 0.0, %v639
    %641 = vdwg.mxu0
    %642 = vmatprep.subr.bf16.mxu0 0
    %643 = vmatpush1.bf16.msra.mxu0 %v541
    %644 = vmatprep.subr.bf16.mxu0 0
    %645 = vmatpush1.bf16.msra.mxu0 %v544
    %646 = vmatprep.subr.bf16.mxu0 0
    %647 = vmatpush1.bf16.msra.mxu0 %v547
    %648 = vmatprep.subr.bf16.mxu0 0
    %649 = vmatpush1.bf16.msra.mxu0 %v567
    %650 = vmatprep.subr.bf16.mxu0 0
    %651 = vmatpush1.bf16.msra.mxu0 0
    %652 = vmatprep.subr.bf16.mxu0 0
    %653 = vmatpush1.bf16.msra.mxu0 0
    %654 = vmatprep.subr.bf16.mxu0 0
    %655 = vmatpush1.bf16.msra.mxu0 0
    %656 = vmatprep.subr.bf16.mxu0 0
    %657 = vmatpush1.bf16.msra.mxu0 0
    %658 = vmatprep.subr.bf16.mxu0 0
    %659 = vmatpush1.bf16.msra.mxu0 0
    %660 = vmatprep.subr.bf16.mxu0 0
    %661 = vmatpush1.bf16.msra.mxu0 0
    %662 = vmatprep.subr.bf16.mxu0 0
    %663 = vmatpush1.bf16.msra.mxu0 0
    %664 = vmatprep.subr.bf16.mxu0 0
    %665 = vmatpush1.bf16.msra.mxu0 0
    %666 = vmatprep.subr.bf16.mxu0 0
    %667 = vmatpush1.bf16.msra.mxu0 0
    %668 = vmatprep.subr.bf16.mxu0 0
    %669 = vmatpush1.bf16.msra.mxu0 0
    %670 = vmatprep.subr.bf16.mxu0 0
    %671 = vmatpush1.bf16.msra.mxu0 0
    %672 = vmatprep.subr.bf16.mxu0 0
    %673 = vmatpush1.bf16.msra.mxu0 0
    %674 = vmatprep.mubr.bf16.mxu0 0
    %675 = vmatmul.mubr.bf16.gmra.mrb[0].mxu0 %v135
    %v676 = vpop.f32.mrb[0].mxu0
    %v677 = vadd.f32 0.0, %v676
    %v678 = vpop.f32.mrb[0].mxu0
    %v679 = vpop.f32.mrb[0].mxu0
    %v680 = vadd.f32 0.0, %v679
    %v681 = vpop.f32.mrb[0].mxu0
    %682 = vmatprep.mubr.bf16.mxu0 0
    %683 = vmatmul.mubr.bf16.gmra.mrb[0].mxu0 %v138
    %v684 = vpop.f32.mrb[0].mxu0
    %v685 = vadd.f32 0.0, %v684
    %v686 = vpop.f32.mrb[0].mxu0
    %v687 = vpop.f32.mrb[0].mxu0
    %v688 = vadd.f32 0.0, %v687
    %v689 = vpop.f32.mrb[0].mxu0
    %690 = vmatprep.mubr.bf16.mxu0 0
    %691 = vmatmul.mubr.bf16.gmra.mrb[0].mxu0 %v141
    %v692 = vpop.f32.mrb[0].mxu0
    %v693 = vadd.f32 0.0, %v692
    %v694 = vpop.f32.mrb[0].mxu0
    %v695 = vpop.f32.mrb[0].mxu0
    %v696 = vadd.f32 0.0, %v695
    %v697 = vpop.f32.mrb[0].mxu0
    %698 = vmatprep.mubr.bf16.mxu0 0
    %699 = vmatmul.mubr.bf16.gmra.mrb[0].mxu0 %v144
    %v700 = vpop.f32.mrb[0].mxu0
    %v701 = vadd.f32 0.0, %v700
    %v702 = vpop.f32.mrb[0].mxu0
    %v703 = vpop.f32.mrb[0].mxu0
    %v704 = vadd.f32 0.0, %v703
    %v705 = vpop.f32.mrb[0].mxu0
    %706 = vdwg.mxu0
    %v707 = vtanh.pop %v604
    %v708 = vtanh.pop %v606
    %v709 = vtanh.pop %v677
    %v710 = vtanh.pop %v608
    %v711 = vtanh.pop %v610
    %v712 = vtanh.pop %v680
    %v713 = vtanh.pop %v614
    %v714 = vtanh.pop %v616
    %v715 = vtanh.pop %v685
    %v716 = vtanh.pop %v618
    %v717 = vtanh.pop %v620
    %v718 = vtanh.pop %v688
    %v719 = vtanh.pop %v624
    %v720 = vtanh.pop %v626
    %v721 = vtanh.pop %v693
    %v722 = vtanh.pop %v628
    %v723 = vtanh.pop %v630
    %v724 = vtanh.pop %v696
    %v725 = vtanh.pop %v634
    %v726 = vtanh.pop %v636
    %v727 = vtanh.pop %v701
    %v728 = vtanh.pop %v638
    %v729 = vtanh.pop %v640
    %v730 = vtanh.pop %v704
    %731 = vmatprep.subr.mxu0 %v708
    %732 = vmatpush1.msra.mxu0 %v707
    %733 = vmatprep.subr.mxu0 %v711
    %734 = vmatpush1.msra.mxu0 %v710
    %735 = vmatprep.subr.mxu0 %v714
    %736 = vmatpush1.msra.mxu0 %v713
    %737 = vmatprep.subr.mxu0 %v717
    %738 = vmatpush1.msra.mxu0 %v716
    %739 = vmatprep.subr.mxu0 %v720
    %740 = vmatpush1.msra.mxu0 %v719
    %741 = vmatprep.subr.mxu0 %v723
    %742 = vmatpush1.msra.mxu0 %v722
    %743 = vmatprep.subr.mxu0 %v726
    %744 = vmatpush1.msra.mxu0 %v725
    %745 = vmatprep.subr.mxu0 %v729
    %746 = vmatpush1.msra.mxu0 %v728
    %747 = vmatprep.subr.mxu0 0.0
    %748 = vmatpush1.msra.mxu0 0.0
    %749 = vmatprep.subr.mxu0 0.0
    %750 = vmatpush1.msra.mxu0 0.0
    %751 = vmatprep.subr.mxu0 0.0
    %752 = vmatpush1.msra.mxu0 0.0
    %753 = vmatprep.subr.mxu0 0.0
    %754 = vmatpush1.msra.mxu0 0.0
    %755 = vmatprep.subr.mxu0 0.0
    %756 = vmatpush1.msra.mxu0 0.0
    %757 = vmatprep.subr.mxu0 0.0
    %758 = vmatpush1.msra.mxu0 0.0
    %759 = vmatprep.subr.mxu0 0.0
    %760 = vmatpush1.msra.mxu0 0.0
    %761 = vmatprep.subr.mxu0 0.0
    %762 = vmatpush1.msra.mxu0 0.0
    %763 = vmatprep.subr.mxu0 0.0
    %764 = vmatpush1.msra.mxu0 0.0
    %765 = vmatprep.subr.mxu0 0.0
    %766 = vmatpush1.msra.mxu0 0.0
    %767 = vmatprep.subr.mxu0 0.0
    %768 = vmatpush1.msra.mxu0 0.0
    %769 = vmatprep.subr.mxu0 0.0
    %770 = vmatpush1.msra.mxu0 0.0
    %771 = vmatprep.subr.mxu0 0.0
    %772 = vmatpush1.msra.mxu0 0.0
    %773 = vmatprep.subr.mxu0 0.0
    %774 = vmatpush1.msra.mxu0 0.0
    %775 = vmatprep.subr.mxu0 0.0
    %776 = vmatpush1.msra.mxu0 0.0
    %777 = vmatprep.subr.mxu0 0.0
    %778 = vmatpush1.msra.mxu0 0.0
    %779 = vmatprep.subr.mxu0 0.0
    %780 = vmatpush1.msra.mxu0 0.0
    %781 = vmatprep.subr.mxu0 0.0
    %782 = vmatpush1.msra.mxu0 0.0
    %783 = vmatprep.subr.mxu0 0.0
    %784 = vmatpush1.msra.mxu0 0.0
    %785 = vmatprep.subr.mxu0 0.0
    %786 = vmatpush1.msra.mxu0 0.0
    %787 = vmatprep.subr.mxu0 0.0
    %788 = vmatpush1.msra.mxu0 0.0
    %789 = vmatprep.subr.mxu0 0.0
    %790 = vmatpush1.msra.mxu0 0.0
    %791 = vmatprep.subr.mxu0 0.0
    %792 = vmatpush1.msra.mxu0 0.0
    %793 = vmatprep.subr.mxu0 0.0
    %794 = vmatpush1.msra.mxu0 0.0
    %795 = vmatprep.mubr.f32.mxu0 0.0
    %796 = vmatmul.mubr.f32.gmra.mrb[0].mxu0 %v320
    %v797 = vpop.f32.mrb[0].mxu0
    %v798 = vadd.f32 0.0, %v797
    %v799 = vpop.f32.mrb[0].mxu0
    %v800 = vadd.f32 0.0, %v799
    %801 = vdwg.mxu0
    %802 = vmatprep.subr.mxu0 0.0
    %803 = vmatpush1.msra.mxu0 %v709
    %804 = vmatprep.subr.mxu0 0.0
    %805 = vmatpush1.msra.mxu0 %v712
    %806 = vmatprep.subr.mxu0 0.0
    %807 = vmatpush1.msra.mxu0 %v715
    %808 = vmatprep.subr.mxu0 0.0
    %809 = vmatpush1.msra.mxu0 %v718
    %810 = vmatprep.subr.mxu0 0.0
    %811 = vmatpush1.msra.mxu0 %v721
    %812 = vmatprep.subr.mxu0 0.0
    %813 = vmatpush1.msra.mxu0 %v724
    %814 = vmatprep.subr.mxu0 0.0
    %815 = vmatpush1.msra.mxu0 %v727
    %816 = vmatprep.subr.mxu0 0.0
    %817 = vmatpush1.msra.mxu0 %v730
    %818 = vmatprep.subr.mxu0 0.0
    %819 = vmatpush1.msra.mxu0 0.0
    %820 = vmatprep.subr.mxu0 0.0
    %821 = vmatpush1.msra.mxu0 0.0
    %822 = vmatprep.subr.mxu0 0.0
    %823 = vmatpush1.msra.mxu0 0.0
    %824 = vmatprep.subr.mxu0 0.0
    %825 = vmatpush1.msra.mxu0 0.0
    %826 = vmatprep.subr.mxu0 0.0
    %827 = vmatpush1.msra.mxu0 0.0
    %828 = vmatprep.subr.mxu0 0.0
    %829 = vmatpush1.msra.mxu0 0.0
    %830 = vmatprep.subr.mxu0 0.0
    %831 = vmatpush1.msra.mxu0 0.0
    %832 = vmatprep.subr.mxu0 0.0
    %833 = vmatpush1.msra.mxu0 0.0
    %834 = vmatprep.subr.mxu0 0.0
    %835 = vmatpush1.msra.mxu0 0.0
    %836 = vmatprep.subr.mxu0 0.0
    %837 = vmatpush1.msra.mxu0 0.0
    %838 = vmatprep.subr.mxu0 0.0
    %839 = vmatpush1.msra.mxu0 0.0
    %840 = vmatprep.subr.mxu0 0.0
    %841 = vmatpush1.msra.mxu0 0.0
    %842 = vmatprep.subr.mxu0 0.0
    %843 = vmatpush1.msra.mxu0 0.0
    %844 = vmatprep.subr.mxu0 0.0
    %845 = vmatpush1.msra.mxu0 0.0
    %846 = vmatprep.subr.mxu0 0.0
    %847 = vmatpush1.msra.mxu0 0.0
    %848 = vmatprep.subr.mxu0 0.0
    %849 = vmatpush1.msra.mxu0 0.0
    %850 = vmatprep.subr.mxu0 0.0
    %851 = vmatpush1.msra.mxu0 0.0
    %852 = vmatprep.subr.mxu0 0.0
    %853 = vmatpush1.msra.mxu0 0.0
    %854 = vmatprep.subr.mxu0 0.0
    %855 = vmatpush1.msra.mxu0 0.0
    %856 = vmatprep.subr.mxu0 0.0
    %857 = vmatpush1.msra.mxu0 0.0
    %858 = vmatprep.subr.mxu0 0.0
    %859 = vmatpush1.msra.mxu0 0.0
    %860 = vmatprep.subr.mxu0 0.0
    %861 = vmatpush1.msra.mxu0 0.0
    %862 = vmatprep.subr.mxu0 0.0
    %863 = vmatpush1.msra.mxu0 0.0
    %864 = vmatprep.subr.mxu0 0.0
    %865 = vmatpush1.msra.mxu0 0.0
    %866 = vmatprep.mubr.f32.mxu0 0.0
    %867 = vmatmul.mubr.f32.gmra.mrb[0].mxu0 %v320
    %v868 = vpop.f32.mrb[0].mxu0
    %v869 = vadd.f32 0.0, %v868
    %v870 = vpop.f32.mrb[0].mxu0
    %871 = vdwg.mxu0
    %v872 = vld [vmem:[%s3 + $0x3] sm:$0x7]
    %v874 = vlaneseq
    %v875 = vshrl.u32 %v874, 7
    %v876 = vsub.s32 0, %v875
    %v877 = vrot.slane %v872, %v876
    %v878 = vlaneseq
    %v879 = vshrl.u32 %v878, 7
    %v880 = vsub.s32 1, %v879
    %v881 = vrot.slane %v872, %v880
    %v882 = vlaneseq
    %v883 = vshrl.u32 %v882, 7
    %v884 = vsub.s32 2, %v883
    %v885 = vrot.slane %v872, %v884
    %v889 = vmul.f32 %v798, %v877
    %v890 = vmul.f32 %v800, %v881
    %v891 = vmul.f32 %v869, %v885
    %v892 = vadd.f32 %v889, %v890
    %v893 = vadd.f32 %v892, %v891
    %894 = vadd.xlane.f32.xlu0 %v893
    %v895 = vpop.xlane.xlu0 %894
    %s896 = sld [smem:[#allocation2 + $0x1]]
    %v897 = vstv %s896
    %v898 = vadd.f32 %v895, %v897
    %v899 = vld [vmem:[%s2 + $0x18] sm:$0xff]
    %v900 = vld [vmem:[%s2 + $0x20] sm:$0xf]
    %v901 = vld [vmem:[%s2 + $0x3c] sm:$0xff]
    %v902 = vld [vmem:[%s2 + $0x44] sm:$0xf]
    %v903 = vld [vmem:[%s2 + $0x60] sm:$0xff]
    %v904 = vld [vmem:[%s2 + $0x68] sm:$0xf]
    %v905 = vld [vmem:[%s2 + $0x84] sm:$0xff]
    %v906 = vld [vmem:[%s2 + $0x8c] sm:$0xf]
    %v907 = vld [vmem:[%s2 + $0xa8] sm:$0xff]
    %v908 = vld [vmem:[%s2 + $0xb0] sm:$0xf]
    %v909 = vld [vmem:[%s2 + $0xcc] sm:$0xff]
    %v910 = vld [vmem:[%s2 + $0xd4] sm:$0xf]
    %v911 = vld [vmem:[%s2 + $0xf0] sm:$0xff]
    %v912 = vld [vmem:[%s2 + $0xf8] sm:$0xf]
    %v927 = vunpack.c.l.b16 %v899
    %v928 = vunpack.c.h.b16 %v899
    %v929 = vunpack.c.l.b16 %v900
    %v930 = vunpack.c.l.b16 %v901
    %v931 = vunpack.c.h.b16 %v901
    %v932 = vunpack.c.l.b16 %v902
    %v933 = vunpack.c.l.b16 %v903
    %v934 = vunpack.c.h.b16 %v903
    %v935 = vunpack.c.l.b16 %v904
    %v936 = vunpack.c.l.b16 %v905
    %v937 = vunpack.c.h.b16 %v905
    %v938 = vunpack.c.l.b16 %v906
    %v939 = vunpack.c.l.b16 %v907
    %v940 = vunpack.c.h.b16 %v907
    %v941 = vunpack.c.l.b16 %v908
    %v942 = vunpack.c.l.b16 %v909
    %v943 = vunpack.c.h.b16 %v909
    %v944 = vunpack.c.l.b16 %v910
    %v945 = vunpack.c.l.b16 %v911
    %v946 = vunpack.c.h.b16 %v911
    %v947 = vunpack.c.l.b16 %v912
    %v948 = vpack.c.b16 %v930, %v927
    %v949 = vpack.c.b16 %v931, %v928
    %v950 = vpack.c.b16 %v932, %v929
    %v951 = vpack.c.b16 %v936, %v933
    %v952 = vpack.c.b16 %v937, %v934
    %v953 = vpack.c.b16 %v938, %v935
    %v954 = vpack.c.b16 %v942, %v939
    %v955 = vpack.c.b16 %v943, %v940
    %v956 = vpack.c.b16 %v944, %v941
    %v957 = vpack.c.b16 %v945, %v945
    %v958 = vpack.c.b16 %v946, %v946
    %v959 = vpack.c.b16 %v947, %v947
    %v970 = vsel %vm146, %v957, 0
    %v973 = vsel %vm146, %v958, 0
    %v976 = vsel %vm146, %v959, 0
    %978 = vmatprep.subr.bf16.mxu0 %v949
    %979 = vmatpush1.bf16.msra.mxu0 %v948
    %980 = vmatprep.subr.bf16.mxu0 %v952
    %981 = vmatpush1.bf16.msra.mxu0 %v951
    %982 = vmatprep.subr.bf16.mxu0 %v955
    %983 = vmatpush1.bf16.msra.mxu0 %v954
    %984 = vmatprep.subr.bf16.mxu0 %v973
    %985 = vmatpush1.bf16.msra.mxu0 %v970
    %986 = vmatprep.subr.bf16.mxu0 0
    %987 = vmatpush1.bf16.msra.mxu0 0
    %988 = vmatprep.subr.bf16.mxu0 0
    %989 = vmatpush1.bf16.msra.mxu0 0
    %990 = vmatprep.subr.bf16.mxu0 0
    %991 = vmatpush1.bf16.msra.mxu0 0
    %992 = vmatprep.subr.bf16.mxu0 0
    %993 = vmatpush1.bf16.msra.mxu0 0
    %994 = vmatprep.subr.bf16.mxu0 0
    %995 = vmatpush1.bf16.msra.mxu0 0
    %996 = vmatprep.subr.bf16.mxu0 0
    %997 = vmatpush1.bf16.msra.mxu0 0
    %998 = vmatprep.subr.bf16.mxu0 0
    %999 = vmatpush1.bf16.msra.mxu0 0
    %1000 = vmatprep.subr.bf16.mxu0 0
    %1001 = vmatpush1.bf16.msra.mxu0 0
    %1002 = vmatprep.subr.bf16.mxu0 0
    %1003 = vmatpush1.bf16.msra.mxu0 0
    %1004 = vmatprep.subr.bf16.mxu0 0
    %1005 = vmatpush1.bf16.msra.mxu0 0
    %1006 = vmatprep.subr.bf16.mxu0 0
    %1007 = vmatpush1.bf16.msra.mxu0 0
    %1008 = vmatprep.subr.bf16.mxu0 0
    %1009 = vmatpush1.bf16.msra.mxu0 0
    %1010 = vmatprep.mubr.bf16.mxu0 0
    %1011 = vmatmul.mubr.bf16.gmra.mrb[0].mxu0 %v135
    %v1012 = vpop.f32.mrb[0].mxu0
    %v1013 = vadd.f32 0.0, %v1012
    %v1014 = vpop.f32.mrb[0].mxu0
    %v1015 = vadd.f32 0.0, %v1014
    %v1016 = vpop.f32.mrb[0].mxu0
    %v1017 = vadd.f32 0.0, %v1016
    %v1018 = vpop.f32.mrb[0].mxu0
    %v1019 = vadd.f32 0.0, %v1018
    %1020 = vmatprep.mubr.bf16.mxu0 0
    %1021 = vmatmul.mubr.bf16.gmra.mrb[0].mxu0 %v138
    %v1022 = vpop.f32.mrb[0].mxu0
    %v1023 = vadd.f32 0.0, %v1022
    %v1024 = vpop.f32.mrb[0].mxu0
    %v1025 = vadd.f32 0.0, %v1024
    %v1026 = vpop.f32.mrb[0].mxu0
    %v1027 = vadd.f32 0.0, %v1026
    %v1028 = vpop.f32.mrb[0].mxu0
    %v1029 = vadd.f32 0.0, %v1028
    %1030 = vmatprep.mubr.bf16.mxu0 0
    %1031 = vmatmul.mubr.bf16.gmra.mrb[0].mxu0 %v141
    %v1032 = vpop.f32.mrb[0].mxu0
    %v1033 = vadd.f32 0.0, %v1032
    %v1034 = vpop.f32.mrb[0].mxu0
    %v1035 = vadd.f32 0.0, %v1034
    %v1036 = vpop.f32.mrb[0].mxu0
    %v1037 = vadd.f32 0.0, %v1036
    %v1038 = vpop.f32.mrb[0].mxu0
    %v1039 = vadd.f32 0.0, %v1038
    %1040 = vmatprep.mubr.bf16.mxu0 0
    %1041 = vmatmul.mubr.bf16.gmra.mrb[0].mxu0 %v144
    %v1042 = vpop.f32.mrb[0].mxu0
    %v1043 = vadd.f32 0.0, %v1042
    %v1044 = vpop.f32.mrb[0].mxu0
    %v1045 = vadd.f32 0.0, %v1044
    %v1046 = vpop.f32.mrb[0].mxu0
    %v1047 = vadd.f32 0.0, %v1046
    %v1048 = vpop.f32.mrb[0].mxu0
    %v1049 = vadd.f32 0.0, %v1048
    %1050 = vdwg.mxu0
    %1051 = vmatprep.subr.bf16.mxu0 0
    %1052 = vmatpush1.bf16.msra.mxu0 %v950
    %1053 = vmatprep.subr.bf16.mxu0 0
    %1054 = vmatpush1.bf16.msra.mxu0 %v953
    %1055 = vmatprep.subr.bf16.mxu0 0
    %1056 = vmatpush1.bf16.msra.mxu0 %v956
    %1057 = vmatprep.subr.bf16.mxu0 0
    %1058 = vmatpush1.bf16.msra.mxu0 %v976
    %1059 = vmatprep.subr.bf16.mxu0 0
    %1060 = vmatpush1.bf16.msra.mxu0 0
    %1061 = vmatprep.subr.bf16.mxu0 0
    %1062 = vmatpush1.bf16.msra.mxu0 0
    %1063 = vmatprep.subr.bf16.mxu0 0
    %1064 = vmatpush1.bf16.msra.mxu0 0
    %1065 = vmatprep.subr.bf16.mxu0 0
    %1066 = vmatpush1.bf16.msra.mxu0 0
    %1067 = vmatprep.subr.bf16.mxu0 0
    %1068 = vmatpush1.bf16.msra.mxu0 0
    %1069 = vmatprep.subr.bf16.mxu0 0
    %1070 = vmatpush1.bf16.msra.mxu0 0
    %1071 = vmatprep.subr.bf16.mxu0 0
    %1072 = vmatpush1.bf16.msra.mxu0 0
    %1073 = vmatprep.subr.bf16.mxu0 0
    %1074 = vmatpush1.bf16.msra.mxu0 0
    %1075 = vmatprep.subr.bf16.mxu0 0
    %1076 = vmatpush1.bf16.msra.mxu0 0
    %1077 = vmatprep.subr.bf16.mxu0 0
    %1078 = vmatpush1.bf16.msra.mxu0 0
    %1079 = vmatprep.subr.bf16.mxu0 0
    %1080 = vmatpush1.bf16.msra.mxu0 0
    %1081 = vmatprep.subr.bf16.mxu0 0
    %1082 = vmatpush1.bf16.msra.mxu0 0
    %1083 = vmatprep.mubr.bf16.mxu0 0
    %1084 = vmatmul.mubr.bf16.gmra.mrb[0].mxu0 %v135
    %v1085 = vpop.f32.mrb[0].mxu0
    %v1086 = vadd.f32 0.0, %v1085
    %v1087 = vpop.f32.mrb[0].mxu0
    %v1088 = vpop.f32.mrb[0].mxu0
    %v1089 = vadd.f32 0.0, %v1088
    %v1090 = vpop.f32.mrb[0].mxu0
    %1091 = vmatprep.mubr.bf16.mxu0 0
    %1092 = vmatmul.mubr.bf16.gmra.mrb[0].mxu0 %v138
    %v1093 = vpop.f32.mrb[0].mxu0
    %v1094 = vadd.f32 0.0, %v1093
    %v1095 = vpop.f32.mrb[0].mxu0
    %v1096 = vpop.f32.mrb[0].mxu0
    %v1097 = vadd.f32 0.0, %v1096
    %v1098 = vpop.f32.mrb[0].mxu0
    %1099 = vmatprep.mubr.bf16.mxu0 0
    %1100 = vmatmul.mubr.bf16.gmra.mrb[0].mxu0 %v141
    %v1101 = vpop.f32.mrb[0].mxu0
    %v1102 = vadd.f32 0.0, %v1101
    %v1103 = vpop.f32.mrb[0].mxu0
    %v1104 = vpop.f32.mrb[0].mxu0
    %v1105 = vadd.f32 0.0, %v1104
    %v1106 = vpop.f32.mrb[0].mxu0
    %1107 = vmatprep.mubr.bf16.mxu0 0
    %1108 = vmatmul.mubr.bf16.gmra.mrb[0].mxu0 %v144
    %v1109 = vpop.f32.mrb[0].mxu0
    %v1110 = vadd.f32 0.0, %v1109
    %v1111 = vpop.f32.mrb[0].mxu0
    %v1112 = vpop.f32.mrb[0].mxu0
    %v1113 = vadd.f32 0.0, %v1112
    %v1114 = vpop.f32.mrb[0].mxu0
    %1115 = vdwg.mxu0
    %v1116 = vtanh.pop %v1013
    %v1117 = vtanh.pop %v1015
    %v1118 = vtanh.pop %v1086
    %v1119 = vtanh.pop %v1017
    %v1120 = vtanh.pop %v1019
    %v1121 = vtanh.pop %v1089
    %v1122 = vtanh.pop %v1023
    %v1123 = vtanh.pop %v1025
    %v1124 = vtanh.pop %v1094
    %v1125 = vtanh.pop %v1027
    %v1126 = vtanh.pop %v1029
    %v1127 = vtanh.pop %v1097
    %v1128 = vtanh.pop %v1033
    %v1129 = vtanh.pop %v1035
    %v1130 = vtanh.pop %v1102
    %v1131 = vtanh.pop %v1037
    %v1132 = vtanh.pop %v1039
    %v1133 = vtanh.pop %v1105
    %v1134 = vtanh.pop %v1043
    %v1135 = vtanh.pop %v1045
    %v1136 = vtanh.pop %v1110
    %v1137 = vtanh.pop %v1047
    %v1138 = vtanh.pop %v1049
    %v1139 = vtanh.pop %v1113
    %1140 = vmatprep.subr.mxu0 %v1117
    %1141 = vmatpush1.msra.mxu0 %v1116
    %1142 = vmatprep.subr.mxu0 %v1120
    %1143 = vmatpush1.msra.mxu0 %v1119
    %1144 = vmatprep.subr.mxu0 %v1123
    %1145 = vmatpush1.msra.mxu0 %v1122
    %1146 = vmatprep.subr.mxu0 %v1126
    %1147 = vmatpush1.msra.mxu0 %v1125
    %1148 = vmatprep.subr.mxu0 %v1129
    %1149 = vmatpush1.msra.mxu0 %v1128
    %1150 = vmatprep.subr.mxu0 %v1132
    %1151 = vmatpush1.msra.mxu0 %v1131
    %1152 = vmatprep.subr.mxu0 %v1135
    %1153 = vmatpush1.msra.mxu0 %v1134
    %1154 = vmatprep.subr.mxu0 %v1138
    %1155 = vmatpush1.msra.mxu0 %v1137
    %1156 = vmatprep.subr.mxu0 0.0
    %1157 = vmatpush1.msra.mxu0 0.0
    %1158 = vmatprep.subr.mxu0 0.0
    %1159 = vmatpush1.msra.mxu0 0.0
    %1160 = vmatprep.subr.mxu0 0.0
    %1161 = vmatpush1.msra.mxu0 0.0
    %1162 = vmatprep.subr.mxu0 0.0
    %1163 = vmatpush1.msra.mxu0 0.0
    %1164 = vmatprep.subr.mxu0 0.0
    %1165 = vmatpush1.msra.mxu0 0.0
    %1166 = vmatprep.subr.mxu0 0.0
    %1167 = vmatpush1.msra.mxu0 0.0
    %1168 = vmatprep.subr.mxu0 0.0
    %1169 = vmatpush1.msra.mxu0 0.0
    %1170 = vmatprep.subr.mxu0 0.0
    %1171 = vmatpush1.msra.mxu0 0.0
    %1172 = vmatprep.subr.mxu0 0.0
    %1173 = vmatpush1.msra.mxu0 0.0
    %1174 = vmatprep.subr.mxu0 0.0
    %1175 = vmatpush1.msra.mxu0 0.0
    %1176 = vmatprep.subr.mxu0 0.0
    %1177 = vmatpush1.msra.mxu0 0.0
    %1178 = vmatprep.subr.mxu0 0.0
    %1179 = vmatpush1.msra.mxu0 0.0
    %1180 = vmatprep.subr.mxu0 0.0
    %1181 = vmatpush1.msra.mxu0 0.0
    %1182 = vmatprep.subr.mxu0 0.0
    %1183 = vmatpush1.msra.mxu0 0.0
    %1184 = vmatprep.subr.mxu0 0.0
    %1185 = vmatpush1.msra.mxu0 0.0
    %1186 = vmatprep.subr.mxu0 0.0
    %1187 = vmatpush1.msra.mxu0 0.0
    %1188 = vmatprep.subr.mxu0 0.0
    %1189 = vmatpush1.msra.mxu0 0.0
    %1190 = vmatprep.subr.mxu0 0.0
    %1191 = vmatpush1.msra.mxu0 0.0
    %1192 = vmatprep.subr.mxu0 0.0
    %1193 = vmatpush1.msra.mxu0 0.0
    %1194 = vmatprep.subr.mxu0 0.0
    %1195 = vmatpush1.msra.mxu0 0.0
    %1196 = vmatprep.subr.mxu0 0.0
    %1197 = vmatpush1.msra.mxu0 0.0
    %1198 = vmatprep.subr.mxu0 0.0
    %1199 = vmatpush1.msra.mxu0 0.0
    %1200 = vmatprep.subr.mxu0 0.0
    %1201 = vmatpush1.msra.mxu0 0.0
    %1202 = vmatprep.subr.mxu0 0.0
    %1203 = vmatpush1.msra.mxu0 0.0
    %1204 = vmatprep.mubr.f32.mxu0 0.0
    %1205 = vmatmul.mubr.f32.gmra.mrb[0].mxu0 %v320
    %v1206 = vpop.f32.mrb[0].mxu0
    %v1207 = vadd.f32 0.0, %v1206
    %v1208 = vpop.f32.mrb[0].mxu0
    %v1209 = vadd.f32 0.0, %v1208
    %1210 = vdwg.mxu0
    %1211 = vmatprep.subr.mxu0 0.0
    %1212 = vmatpush1.msra.mxu0 %v1118
    %1213 = vmatprep.subr.mxu0 0.0
    %1214 = vmatpush1.msra.mxu0 %v1121
    %1215 = vmatprep.subr.mxu0 0.0
    %1216 = vmatpush1.msra.mxu0 %v1124
    %1217 = vmatprep.subr.mxu0 0.0
    %1218 = vmatpush1.msra.mxu0 %v1127
    %1219 = vmatprep.subr.mxu0 0.0
    %1220 = vmatpush1.msra.mxu0 %v1130
    %1221 = vmatprep.subr.mxu0 0.0
    %1222 = vmatpush1.msra.mxu0 %v1133
    %1223 = vmatprep.subr.mxu0 0.0
    %1224 = vmatpush1.msra.mxu0 %v1136
    %1225 = vmatprep.subr.mxu0 0.0
    %1226 = vmatpush1.msra.mxu0 %v1139
    %1227 = vmatprep.subr.mxu0 0.0
    %1228 = vmatpush1.msra.mxu0 0.0
    %1229 = vmatprep.subr.mxu0 0.0
    %1230 = vmatpush1.msra.mxu0 0.0
    %1231 = vmatprep.subr.mxu0 0.0
    %1232 = vmatpush1.msra.mxu0 0.0
    %1233 = vmatprep.subr.mxu0 0.0
    %1234 = vmatpush1.msra.mxu0 0.0
    %1235 = vmatprep.subr.mxu0 0.0
    %1236 = vmatpush1.msra.mxu0 0.0
    %1237 = vmatprep.subr.mxu0 0.0
    %1238 = vmatpush1.msra.mxu0 0.0
    %1239 = vmatprep.subr.mxu0 0.0
    %1240 = vmatpush1.msra.mxu0 0.0
    %1241 = vmatprep.subr.mxu0 0.0
    %1242 = vmatpush1.msra.mxu0 0.0
    %1243 = vmatprep.subr.mxu0 0.0
    %1244 = vmatpush1.msra.mxu0 0.0
    %1245 = vmatprep.subr.mxu0 0.0
    %1246 = vmatpush1.msra.mxu0 0.0
    %1247 = vmatprep.subr.mxu0 0.0
    %1248 = vmatpush1.msra.mxu0 0.0
    %1249 = vmatprep.subr.mxu0 0.0
    %1250 = vmatpush1.msra.mxu0 0.0
    %1251 = vmatprep.subr.mxu0 0.0
    %1252 = vmatpush1.msra.mxu0 0.0
    %1253 = vmatprep.subr.mxu0 0.0
    %1254 = vmatpush1.msra.mxu0 0.0
    %1255 = vmatprep.subr.mxu0 0.0
    %1256 = vmatpush1.msra.mxu0 0.0
    %1257 = vmatprep.subr.mxu0 0.0
    %1258 = vmatpush1.msra.mxu0 0.0
    %1259 = vmatprep.subr.mxu0 0.0
    %1260 = vmatpush1.msra.mxu0 0.0
    %1261 = vmatprep.subr.mxu0 0.0
    %1262 = vmatpush1.msra.mxu0 0.0
    %1263 = vmatprep.subr.mxu0 0.0
    %1264 = vmatpush1.msra.mxu0 0.0
    %1265 = vmatprep.subr.mxu0 0.0
    %1266 = vmatpush1.msra.mxu0 0.0
    %1267 = vmatprep.subr.mxu0 0.0
    %1268 = vmatpush1.msra.mxu0 0.0
    %1269 = vmatprep.subr.mxu0 0.0
    %1270 = vmatpush1.msra.mxu0 0.0
    %1271 = vmatprep.subr.mxu0 0.0
    %1272 = vmatpush1.msra.mxu0 0.0
    %1273 = vmatprep.subr.mxu0 0.0
    %1274 = vmatpush1.msra.mxu0 0.0
    %1275 = vmatprep.mubr.f32.mxu0 0.0
    %1276 = vmatmul.mubr.f32.gmra.mrb[0].mxu0 %v320
    %v1277 = vpop.f32.mrb[0].mxu0
    %v1278 = vadd.f32 0.0, %v1277
    %v1279 = vpop.f32.mrb[0].mxu0
    %1280 = vdwg.mxu0
    %v1281 = vld [vmem:[%s3 + $0x6] sm:$0x7]
    %v1283 = vlaneseq
    %v1284 = vshrl.u32 %v1283, 7
    %v1285 = vsub.s32 0, %v1284
    %v1286 = vrot.slane %v1281, %v1285
    %v1287 = vlaneseq
    %v1288 = vshrl.u32 %v1287, 7
    %v1289 = vsub.s32 1, %v1288
    %v1290 = vrot.slane %v1281, %v1289
    %v1291 = vlaneseq
    %v1292 = vshrl.u32 %v1291, 7
    %v1293 = vsub.s32 2, %v1292
    %v1294 = vrot.slane %v1281, %v1293
    %v1298 = vmul.f32 %v1207, %v1286
    %v1299 = vmul.f32 %v1209, %v1290
    %v1300 = vmul.f32 %v1278, %v1294
    %v1301 = vadd.f32 %v1298, %v1299
    %v1302 = vadd.f32 %v1301, %v1300
    %1303 = vadd.xlane.f32.xlu0 %v1302
    %v1304 = vpop.xlane.xlu0 %1303
    %s1305 = sld [smem:[#allocation2 + $0x2]]
    %v1306 = vstv %s1305
    %v1307 = vadd.f32 %v1304, %v1306
    %v1308 = vadd.f32 %v489, %v898
    %v1309 = vadd.f32 %v1308, %v1307
    %v1310 = vmul.f32 %v1309, 0.33333334
    %v1311 = vsub.f32 %v489, %v1310
    %v1312 = vmul.f32 %v1311, %v1311
    %v1313 = vsub.f32 %v898, %v1310
    %v1314 = vmul.f32 %v1313, %v1313
    %v1315 = vadd.f32 %v1312, %v1314
    %v1316 = vsub.f32 %v1307, %v1310
    %v1317 = vmul.f32 %v1316, %v1316
    %v1318 = vadd.f32 %v1315, %v1317
    %v1319 = vmul.f32 %v1318, 0.5
    %v1320 = vrsqrt.pop %v1319
    %v1321 = vmul.f32 %v1319, %v1320
    %vm1322 = vcmp.eq.f32.partialorder %v1319, inf
    %v1323 = vsel %vm1322, %v1319, %v1321
    %vm1324 = vcmp.eq.f32.partialorder %v1319, 0.0
    %v1325 = vand.u32 %v1319, 2147483648
    %v1326 = vsel %vm1324, %v1325, %v1323
    %v1327 = vmin.f32 %v489, %v898
    %v1328 = vmax.f32 %v489, %v898
    %v1329 = vmin.f32 %v1327, %v1307
    %v1330 = vmax.f32 %v1328, %v1307
    %1331 = vst [vmem:[%s5] sm:$0xff] %v1310
    %s1332 = scalar_lea.vmem %s5, 8
    %1333 = vst [vmem:[%s1332] sm:$0xff] %v1329
    %s1334 = scalar_lea.vmem %s5, 16
    %1335 = vst [vmem:[%s1334] sm:$0xff] %v1330
    %s1336 = scalar_lea.vmem %s5, 24
    %1337 = vst [vmem:[%s1336] sm:$0xff] %v1326
    // Predicated region
    $region26: #{ensemble_forward.1} parent=1 // pred_check
      _
    $region27: #{ensemble_forward.1} parent=1 // pred_check_branch
      %1339 = sbr.rel (0) target = $region29
    $region28: #{ensemble_forward.1} parent=1 // pred_region
      _
    $region29: #{ensemble_forward.1} parent=1 // pred_fallthru
      _
    // Predicated region
    $region30: #{ensemble_forward.1} parent=1 // pred_check
      _
    $region31: #{ensemble_forward.1} parent=1 // pred_check_branch
      %1341 = sbr.rel (0) target = $region33
    $region32: #{ensemble_forward.1} parent=1 // pred_region
      _
    $region33: #{ensemble_forward.1} parent=1 // pred_fallthru
      _
    %1342 = vsyncpa [#allocation3], 1

</llo_original>
